<compile_context>
chip_gen: v6e
topology: v6e:2x2x1
jax: 0.10.0
libtpu: 0.0.40
codegen_flags: <defaults>
</compile_context>

<pallas_src>
import numpy as np
import jax
import jax.numpy as jnp
from jax.experimental import pallas as pl
from jax.experimental.pallas import tpu as pltpu


# ---------------------------------------------------------------------------
# Kernels
# ---------------------------------------------------------------------------

def _noisy_linear_kernel(x_ref, xs_ref, wmu_ref, wsig_ref, eout_ref, b_ref, o_ref):
    """One (out-tile i, k-tile) step of
         out = x @ Wmu_t + ((x * eps_in) @ Wsig_t) * eps_out + b
    The output block is resident across the k axis (its index_map ignores k),
    so it doubles as the f32 accumulator; it is seeded with the bias at k == 0.
    """
    k = pl.program_id(1)

    @pl.when(k == 0)
    def _():
        o_ref[...] = jnp.zeros_like(o_ref) + b_ref[...]       # broadcast bias row

    mu = jnp.dot(x_ref[...], wmu_ref[...], preferred_element_type=jnp.float32)
    sg = jnp.dot(xs_ref[...], wsig_ref[...], preferred_element_type=jnp.float32)
    o_ref[...] += mu + sg * eout_ref[...]


def _plain_linear_kernel(x_ref, wmu_ref, b_ref, o_ref):
    """Eval path: out = x @ Wmu_t + bias_mu (no noise tensors streamed at all)."""
    k = pl.program_id(1)

    @pl.when(k == 0)
    def _():
        o_ref[...] = jnp.zeros_like(o_ref) + b_ref[...]

    o_ref[...] += jnp.dot(x_ref[...], wmu_ref[...],
                          preferred_element_type=jnp.float32)


# ---------------------------------------------------------------------------
# Tiling / layout helpers
# ---------------------------------------------------------------------------

def _round_up(x, m):
    return ((x + m - 1) // m) * m


def _pick_tile(padded, cap):
    """Largest 128-multiple tile <= cap that divides `padded` (padded % 128 == 0)."""
    t = max(128, min(padded, (cap // 128) * 128))
    while padded % t or t % 128:
        t -= 128
    return t


def _choose_tiles(in_f, out_f, max_tk=1024, max_tn=512):
    Kp = _round_up(in_f, 128)
    Np = _round_up(out_f, 128)
    tk = _pick_tile(Kp, max_tk)
    # Keep >= 2 out-tiles whenever Np allows so the "parallel" axis can split
    # across the two v7x TensorCores (harmless on v5e/v6e).
    tn_cap = min(max_tn, Np // 2) if Np >= 256 else max_tn
    tn = _pick_tile(Np, tn_cap)
    return tk, Kp, tn, Np


def _pad_to(a, shape):
    pads = tuple((0, s - d) for d, s in zip(a.shape, shape))
    if all(p == (0, 0) for p in pads):
        return a
    return jnp.pad(a, pads)


# ---------------------------------------------------------------------------
# One-time weight preparation (init / post-optimizer-step, NOT per forward)
# ---------------------------------------------------------------------------

def prepare_noisy_linear(weight_mu, weight_sigma, *, compute_dtype=jnp.bfloat16,
                         max_tk=1024, max_tn=512):
    """Relayout the weights once: transpose to [in, out], zero-pad to (Kp, Np),
    cast to the MXU compute dtype. The forward pass then streams these directly."""
    out_f, in_f = weight_mu.shape
    tk, Kp, tn, Np = _choose_tiles(in_f, out_f, max_tk, max_tn)
    wmu_t = _pad_to(weight_mu.T, (Kp, Np)).astype(compute_dtype)
    wsig_t = _pad_to(weight_sigma.T, (Kp, Np)).astype(compute_dtype)
    return dict(wmu_t=wmu_t, wsig_t=wsig_t,
                in_features=in_f, out_features=out_f,
                tk=tk, Kp=Kp, tn=tn, Np=Np, compute_dtype=compute_dtype)


# ---------------------------------------------------------------------------
# Forward wrapper
# ---------------------------------------------------------------------------

def noisy_linear_forward(x, prep, eps_in, eps_out, bias_mu, bias_sigma,
                         bias_epsilon, *, training=True):
    """Exact math of NoisyLinear.forward (f32 output).

    x:        (B, in_features) f32
    prep:     dict from prepare_noisy_linear (pre-transposed / padded weights)
    eps_in:   (in_features,)   factorized-noise input factor
    eps_out:  (out_features,)  factorized-noise output factor
              (weight_epsilon == outer(eps_out, eps_in), as reset_noise() builds it)
    bias_*:   (out_features,)
    """
    B, in_f = x.shape
    assert in_f == prep["in_features"]
    out_f = prep["out_features"]
    tk, Kp, tn, Np = prep["tk"], prep["Kp"], prep["tn"], prep["Np"]
    cdt = prep["compute_dtype"]

    Bp = _round_up(B, 8)
    grid = (Np // tn, Kp // tk)            # (out tiles, k tiles); reduction last

    x_p = _pad_to(x.astype(jnp.float32), (Bp, Kp))

    x_spec = pl.BlockSpec((Bp, tk), lambda i, k: (0, k))
    w_spec = pl.BlockSpec((tk, tn), lambda i, k: (k, i))
    row_spec = pl.BlockSpec((1, tn), lambda i, k: (0, i))
    out_spec = pl.BlockSpec((Bp, tn), lambda i, k: (0, i))

    cparams = pltpu.CompilerParams(
        dimension_semantics=("parallel", "arbitrary"),
        vmem_limit_bytes=32 * 1024 * 1024)
    out_shape = jax.ShapeDtypeStruct((Bp, Np), jnp.float32)

    if not training:
        b = _pad_to(bias_mu.astype(jnp.float32).reshape(1, out_f), (1, Np))
        out_p = pl.pallas_call(
            _plain_linear_kernel,
            out_shape=out_shape,
            grid=grid,
            in_specs=[x_spec, w_spec, row_spec],
            out_specs=out_spec,
            compiler_params=cparams,
        )(x_p.astype(cdt), prep["wmu_t"], b)
        return out_p[:B, :out_f]

    # Tiny wrapper-side prep (fuses in XLA): effective bias, eps_out row,
    # and the (x * eps_in) factor for the sigma-path dot.
    b = bias_mu.astype(jnp.float32) + bias_sigma.astype(jnp.float32) * bias_epsilon.astype(jnp.float32)
    b = _pad_to(b.reshape(1, out_f), (1, Np))
    eout = _pad_to(eps_out.astype(jnp.float32).reshape(1, out_f), (1, Np))
    xs_p = x_p * _pad_to(eps_in.astype(jnp.float32).reshape(1, in_f), (1, Kp))

    out_p = pl.pallas_call(
        _noisy_linear_kernel,
        out_shape=out_shape,
        grid=grid,
        in_specs=[x_spec, x_spec, w_spec, w_spec, row_spec, row_spec],
        out_specs=out_spec,
        compiler_params=cparams,
    )(x_p.astype(cdt), xs_p.astype(cdt), prep["wmu_t"], prep["wsig_t"], eout, b)
    return out_p[:B, :out_f]


# ---------------------------------------------------------------------------
# Parameter / noise init (reset_parameters() + reset_noise())
# ---------------------------------------------------------------------------

def _scale_noise(key, size):
    x = jax.random.normal(key, (size,), dtype=jnp.float32)
    return jnp.sign(x) * jnp.sqrt(jnp.abs(x))


def init_noisy_linear_params(key, in_features, out_features, std_init=0.1):
    """Deterministic re-implementation of reset_parameters() + reset_noise().
    Noise stays factorized (eps_in, eps_out); weight_epsilon is only
    materialized here for the reference check, never fed to the kernel."""
    k_wmu, k_bmu, k_ein, k_eout, k_beps = jax.random.split(key, 5)
    mu_range = 1.0 / np.sqrt(in_features)

    weight_mu = jax.random.uniform(
        k_wmu, (out_features, in_features), jnp.float32, -mu_range, mu_range)
    weight_sigma = jnp.full((out_features, in_features),
                            std_init / np.sqrt(in_features), jnp.float32)
    bias_mu = jax.random.uniform(
        k_bmu, (out_features,), jnp.float32, -mu_range, mu_range)
    bias_sigma = jnp.full((out_features,),
                          std_init / np.sqrt(out_features), jnp.float32)

    eps_in = _scale_noise(k_ein, in_features)
    eps_out = _scale_noise(k_eout, out_features)
    bias_epsilon = _scale_noise(k_beps, out_features)

    return dict(weight_mu=weight_mu, weight_sigma=weight_sigma,
                eps_in=eps_in, eps_out=eps_out,
                weight_epsilon=jnp.outer(eps_out, eps_in),   # reference-check only
                bias_mu=bias_mu, bias_sigma=bias_sigma,
                bias_epsilon=bias_epsilon)


def _reference(x, p, training):
    xn = np.asarray(x, np.float64)
    wmu = np.asarray(p["weight_mu"], np.float64)
    bmu = np.asarray(p["bias_mu"], np.float64)
    if not training:
        return xn @ wmu.T + bmu
    w = wmu + (np.asarray(p["weight_sigma"], np.float64)
               * np.asarray(p["weight_epsilon"], np.float64))
    b = bmu + (np.asarray(p["bias_sigma"], np.float64)
               * np.asarray(p["bias_epsilon"], np.float64))
    return xn @ w.T + b


if __name__ == "__main__":
    key = jax.random.PRNGKey(0)

    # (B, in, out, max_tk, max_tn):
    #  1) tiny DQN-head-like shape (single padded tile)
    #  2) small shape with reduced tile caps -> grid (2 out-tiles, 2 k-tiles):
    #     exercises multi-step accumulation into the resident output block
    #  3) realistic hidden layer at the default (large) tile caps
    cases = [
        (2, 32, 16, 1024, 512),
        (16, 512, 256, 256, 128),
        (32, 1024, 512, 1024, 512),
    ]

    for (B, in_f, out_f, max_tk, max_tn) in cases:
        k_params, k_x, key = jax.random.split(key, 3)
        params = init_noisy_linear_params(k_params, in_f, out_f)
        x = jax.random.normal(k_x, (B, in_f), dtype=jnp.float32)

        for cdt, rtol, atol in ((jnp.float32, 1e-4, 1e-4),
                                (jnp.bfloat16, 3e-2, 3e-2)):
            prep = prepare_noisy_linear(
                params["weight_mu"], params["weight_sigma"],
                compute_dtype=cdt, max_tk=max_tk, max_tn=max_tn)

            for training in (True, False):
                out = noisy_linear_forward(
                    x, prep, params["eps_in"], params["eps_out"],
                    params["bias_mu"], params["bias_sigma"],
                    params["bias_epsilon"], training=training)
                out = jax.block_until_ready(out)
                assert out.shape == (B, out_f)

                ref = _reference(x, params, training)
                np.testing.assert_allclose(np.asarray(out, np.float64), ref,
                                           rtol=rtol, atol=atol)

    print("KERNEL_OK")
</pallas_src>

<mosaic_0001>
module attributes {stable_mosaic.version = 11 : i64} {
  func.func @_noisy_linear_kernel(%arg0: i32, %arg1: i32, %arg2: memref<8x128xf32, #tpu.memory_space<vmem>>, %arg3: memref<8x128xf32, #tpu.memory_space<vmem>>, %arg4: memref<128x128xf32, #tpu.memory_space<vmem>>, %arg5: memref<128x128xf32, #tpu.memory_space<vmem>>, %arg6: memref<1x128xf32, #tpu.memory_space<vmem>>, %arg7: memref<1x128xf32, #tpu.memory_space<vmem>>, %arg8: memref<8x128xf32, #tpu.memory_space<vmem>>) attributes {dimension_semantics = [#tpu.dimension_semantics<parallel>, #tpu.dimension_semantics<arbitrary>], iteration_bounds = array<i64: 1, 1>, scalar_prefetch = 0 : i64, scratch_operands = 0 : i64, tpu.core_type = #tpu.core_type<tc>, window_params = [{transform_indices = @transform_0, window_bounds = array<i64: 8, 128>}, {transform_indices = @transform_1, window_bounds = array<i64: 8, 128>}, {transform_indices = @transform_2, window_bounds = array<i64: 128, 128>}, {transform_indices = @transform_3, window_bounds = array<i64: 128, 128>}, {transform_indices = @transform_4, window_bounds = array<i64: 1, 128>}, {transform_indices = @transform_5, window_bounds = array<i64: 1, 128>}, {transform_indices = @transform_6, window_bounds = array<i64: 8, 128>}]} {
    %c0_i32 = arith.constant 0 : i32
    %0 = arith.cmpi eq, %arg1, %c0_i32 : i32
    %1 = arith.extui %0 : i1 to i32
    %c0_i32_0 = arith.constant 0 : i32
    %2 = arith.cmpi ne, %1, %c0_i32_0 : i32
    scf.if %2 {
      %cst_15 = arith.constant 0.000000e+00 : f32
      %16 = vector.broadcast %cst_15 : f32 to vector<8x128xf32>
      %c0_16 = arith.constant 0 : index
      %c0_17 = arith.constant 0 : index
      %17 = vector.load %arg7[%c0_16, %c0_17] : memref<1x128xf32, #tpu.memory_space<vmem>>, vector<1x128xf32>
      %18 = vector.broadcast %17 : vector<1x128xf32> to vector<8x128xf32>
      %19 = arith.addf %16, %18 : vector<8x128xf32>
      %c0_18 = arith.constant 0 : index
      %c0_19 = arith.constant 0 : index
      %20 = vector.load %arg8[%c0_18, %c0_19] : memref<8x128xf32, #tpu.memory_space<vmem>>, vector<8x128xf32>
      tpu.vector_store %arg8[%c0_18, %c0_19], %19 {strides = array<i32>} : memref<8x128xf32, #tpu.memory_space<vmem>>, vector<8x128xf32>,
    } else {
    }
    %c0 = arith.constant 0 : index
    %c0_1 = arith.constant 0 : index
    %3 = vector.load %arg2[%c0, %c0_1] : memref<8x128xf32, #tpu.memory_space<vmem>>, vector<8x128xf32>
    %c0_2 = arith.constant 0 : index
    %c0_3 = arith.constant 0 : index
    %4 = vector.load %arg4[%c0_2, %c0_3] : memref<128x128xf32, #tpu.memory_space<vmem>>, vector<128x128xf32>
    %cst = arith.constant dense<0.000000e+00> : vector<8x128xf32>
    %5 = tpu.matmul %3, %4, %cst {dimension_numbers = #tpu.dot_dimension_numbers<[1], [0], [0], [1], [0, 0, 1, 1], [], []>} : vector<8x128xf32>, vector<128x128xf32>, vector<8x128xf32> -> vector<8x128xf32>
    %c0_4 = arith.constant 0 : index
    %c0_5 = arith.constant 0 : index
    %6 = vector.load %arg3[%c0_4, %c0_5] : memref<8x128xf32, #tpu.memory_space<vmem>>, vector<8x128xf32>
    %c0_6 = arith.constant 0 : index
    %c0_7 = arith.constant 0 : index
    %7 = vector.load %arg5[%c0_6, %c0_7] : memref<128x128xf32, #tpu.memory_space<vmem>>, vector<128x128xf32>
    %cst_8 = arith.constant dense<0.000000e+00> : vector<8x128xf32>
    %8 = tpu.matmul %6, %7, %cst_8 {dimension_numbers = #tpu.dot_dimension_numbers<[1], [0], [0], [1], [0, 0, 1, 1], [], []>} : vector<8x128xf32>, vector<128x128xf32>, vector<8x128xf32> -> vector<8x128xf32>
    %c0_9 = arith.constant 0 : index
    %c0_10 = arith.constant 0 : index
    %9 = vector.load %arg8[%c0_9, %c0_10] : memref<8x128xf32, #tpu.memory_space<vmem>>, vector<8x128xf32>
    %c0_11 = arith.constant 0 : index
    %c0_12 = arith.constant 0 : index
    %10 = vector.load %arg6[%c0_11, %c0_12] : memref<1x128xf32, #tpu.memory_space<vmem>>, vector<1x128xf32>
    %11 = vector.broadcast %10 : vector<1x128xf32> to vector<8x128xf32>
    %12 = arith.mulf %8, %11 : vector<8x128xf32>
    %13 = arith.addf %5, %12 : vector<8x128xf32>
    %14 = arith.addf %9, %13 : vector<8x128xf32>
    %c0_13 = arith.constant 0 : index
    %c0_14 = arith.constant 0 : index
    %15 = vector.load %arg8[%c0_13, %c0_14] : memref<8x128xf32, #tpu.memory_space<vmem>>, vector<8x128xf32>
    tpu.vector_store %arg8[%c0_13, %c0_14], %14 {strides = array<i32>} : memref<8x128xf32, #tpu.memory_space<vmem>>, vector<8x128xf32>,
    return
  }
  func.func @transform_0(%arg0: i32, %arg1: i32) -> (i32, i32) {
    %c0_i32 = arith.constant 0 : i32
    %c0_i32_0 = arith.constant 0 : i32
    return %c0_i32, %arg1 : i32, i32
  }
  func.func @transform_1(%arg0: i32, %arg1: i32) -> (i32, i32) {
    %c0_i32 = arith.constant 0 : i32
    %c0_i32_0 = arith.constant 0 : i32
    return %c0_i32, %arg1 : i32, i32
  }
  func.func @transform_2(%arg0: i32, %arg1: i32) -> (i32, i32) {
    %c0_i32 = arith.constant 0 : i32
    return %arg1, %arg0 : i32, i32
  }
  func.func @transform_3(%arg0: i32, %arg1: i32) -> (i32, i32) {
    %c0_i32 = arith.constant 0 : i32
    return %arg1, %arg0 : i32, i32
  }
  func.func @transform_4(%arg0: i32, %arg1: i32) -> (i32, i32) {
    %c0_i32 = arith.constant 0 : i32
    %c0_i32_0 = arith.constant 0 : i32
    return %c0_i32, %arg0 : i32, i32
  }
  func.func @transform_5(%arg0: i32, %arg1: i32) -> (i32, i32) {
    %c0_i32 = arith.constant 0 : i32
    %c0_i32_0 = arith.constant 0 : i32
    return %c0_i32, %arg0 : i32, i32
  }
  func.func @transform_6(%arg0: i32, %arg1: i32) -> (i32, i32) {
    %c0_i32 = arith.constant 0 : i32
    %c0_i32_0 = arith.constant 0 : i32
    return %c0_i32, %arg0 : i32, i32
  }
}

</mosaic_0001>

<llo_original>
// kernel: tpu_custom_call.1
$region0: #{tpu_custom_call.1}
  #allocation0 [shape = 'u32[]', space=smem, size = 0x4, offset = 0x4, fixed_abs, tag = 'smem constant byte address 0x4 - core index']
  #allocation1 [shape = 'u32[144,128]{1,0:T(1,128)}', space=vmem, size = 0x12000, scoped, tag = 'internal scratch']
  %s0 = inlined_call_operand.hbm [shape: f32[8,128], index: 0, kind: input, shape index: {}]
  %s1 = inlined_call_operand.hbm [shape: f32[8,128], index: 1, kind: input, shape index: {}]
  %s2 = inlined_call_operand.hbm [shape: f32[128,128], index: 2, kind: input, shape index: {}]
  %s3 = inlined_call_operand.hbm [shape: f32[128,128], index: 3, kind: input, shape index: {}]
  %s4 = inlined_call_operand.vmem [shape: f32[1,128], index: 4, kind: input, shape index: {}]
  %s5 = inlined_call_operand.vmem [shape: f32[1,128], index: 5, kind: input, shape index: {}]
  %s6 = inlined_call_operand.hbm [shape: f32[8,128], index: 6, kind: output, shape index: {}]
  %s7 = sld [smem:[#allocation0]]
  $region54: #{tpu_custom_call.1} parent=0
    _
  %s9 = ssub.s32 1, %s7
  %s10 = scalar_select 0, %s9, %s7
  $region1: #{tpu_custom_call.1} parent=0
    #allocation2 [shape = 'u8[4096]{0}', space=vmem, size = 0x1000, scoped, tag = 'input window, operand 0, single buffered']
    #allocation3 [shape = 's32[1]{0}', space=sflag, size = 0x4, scoped, tag = 'scoped memory for tpu_custom_call.1']
    #allocation4 [shape = 's32[1]{0}', space=sflag, size = 0x4, scoped, tag = 'scoped memory for tpu_custom_call.1']
    #allocation5 [shape = 'u8[4096]{0}', space=vmem, size = 0x1000, scoped, tag = 'input window, operand 1, single buffered']
    #allocation6 [shape = 's32[1]{0}', space=sflag, size = 0x4, scoped, tag = 'scoped memory for tpu_custom_call.1']
    #allocation7 [shape = 'u8[65536]{0}', space=vmem, size = 0x10000, scoped, tag = 'input window, operand 2, single buffered']
    #allocation8 [shape = 'u8[65536]{0}', space=vmem, size = 0x10000, scoped, tag = 'input window, operand 3, single buffered']
    #allocation9 [shape = 's32[1]{0}', space=sflag, size = 0x4, scoped, tag = 'scoped memory for tpu_custom_call.1']
    #allocation10 [shape = 'u8[4096]{0}', space=vmem, size = 0x1000, scoped, tag = 'output window, operand 0, single buffered']
    %11 = vsyncpa [#allocation3], 0
    %12 = vsyncpa [#allocation6], 0
    %13 = vsyncpa [#allocation9], 0
    %14 = vsyncpa [#allocation4], 0
    // Predicated region
    $region2: #{tpu_custom_call.1} parent=1 // pred_check
      _
    $region3: #{tpu_custom_call.1} parent=1 // pred_check_branch
      %16 = sbr.rel (0) target = $region5
    $region4: #{tpu_custom_call.1} parent=1 // pred_region
      %s18 = ssub.s32 128, 128
      %19 = vsyncadd [#allocation3], %s18
      %s21 = sshll.u32 [#allocation2], 4
      %s22 = int_to_ptr.vmem [resolvable:$true] %s21
      %24 = dma.hbm_to_vmem [thread:$0]  %s0, 128, %s22, [#allocation3]
    $region5: #{tpu_custom_call.1} parent=1 // pred_fallthru
      _
    // Predicated region
    $region6: #{tpu_custom_call.1} parent=1 // pred_check
      _
    $region7: #{tpu_custom_call.1} parent=1 // pred_check_branch
      %26 = sbr.rel (0) target = $region9
    $region8: #{tpu_custom_call.1} parent=1 // pred_region
      %s28 = ssub.s32 128, 128
      %29 = vsyncadd [#allocation6], %s28
      %s31 = sshll.u32 [#allocation5], 4
      %s32 = int_to_ptr.vmem [resolvable:$true] %s31
      %34 = dma.hbm_to_vmem [thread:$0]  %s1, 128, %s32, [#allocation6]
    $region9: #{tpu_custom_call.1} parent=1 // pred_fallthru
      _
    // Predicated region
    $region10: #{tpu_custom_call.1} parent=1 // pred_check
      _
    $region11: #{tpu_custom_call.1} parent=1 // pred_check_branch
      %36 = sbr.rel (0) target = $region13
    $region12: #{tpu_custom_call.1} parent=1 // pred_region
      %s38 = ssub.s32 2048, 2048
      %39 = vsyncadd [#allocation6], %s38
      %s40 = sshll.u32 [#allocation7], 4
      %s41 = int_to_ptr.vmem [resolvable:$true] %s40
      %46 = dma.hbm_to_vmem [thread:$0]  %s2, 2048, %s41, [#allocation6], 128, 128, 8
    $region13: #{tpu_custom_call.1} parent=1 // pred_fallthru
      _
    // Predicated region
    $region14: #{tpu_custom_call.1} parent=1 // pred_check
      _
    $region15: #{tpu_custom_call.1} parent=1 // pred_check_branch
      %48 = sbr.rel (0) target = $region17
    $region16: #{tpu_custom_call.1} parent=1 // pred_region
      %s50 = ssub.s32 2048, 2048
      %51 = vsyncadd [#allocation9], %s50
      %s52 = sshll.u32 [#allocation8], 4
      %s53 = int_to_ptr.vmem [resolvable:$true] %s52
      %58 = dma.hbm_to_vmem [thread:$0]  %s3, 2048, %s53, [#allocation9], 128, 128, 8
    $region17: #{tpu_custom_call.1} parent=1 // pred_fallthru
      _
    // Predicated region
    $region18: #{tpu_custom_call.1} parent=1 // pred_check
      _
    $region19: #{tpu_custom_call.1} parent=1 // pred_check_branch
      %60 = sbr.rel (0) target = $region21
    $region20: #{tpu_custom_call.1} parent=1 // pred_region
      _
    $region21: #{tpu_custom_call.1} parent=1 // pred_fallthru
      _
    // Predicated region
    $region22: #{tpu_custom_call.1} parent=1 // pred_check
      _
    $region23: #{tpu_custom_call.1} parent=1 // pred_check_branch
      %62 = sbr.rel (0) target = $region25
    $region24: #{tpu_custom_call.1} parent=1 // pred_region
      _
    $region25: #{tpu_custom_call.1} parent=1 // pred_fallthru
      _
    // Predicated region
    $region26: #{tpu_custom_call.1} parent=1 // pred_check
      _
    $region27: #{tpu_custom_call.1} parent=1 // pred_check_branch
      %64 = sbr.rel (0) target = $region29
    $region28: #{tpu_custom_call.1} parent=1 // pred_region
      %65 = dma.done [#allocation3], 128
    $region29: #{tpu_custom_call.1} parent=1 // pred_fallthru
      _
    // Predicated region
    $region30: #{tpu_custom_call.1} parent=1 // pred_check
      _
    $region31: #{tpu_custom_call.1} parent=1 // pred_check_branch
      %67 = sbr.rel (0) target = $region33
    $region32: #{tpu_custom_call.1} parent=1 // pred_region
      %68 = dma.done [#allocation6], 128
    $region33: #{tpu_custom_call.1} parent=1 // pred_fallthru
      _
    // Predicated region
    $region34: #{tpu_custom_call.1} parent=1 // pred_check
      _
    $region35: #{tpu_custom_call.1} parent=1 // pred_check_branch
      %70 = sbr.rel (0) target = $region37
    $region36: #{tpu_custom_call.1} parent=1 // pred_region
      %71 = dma.done [#allocation6], 2048
    $region37: #{tpu_custom_call.1} parent=1 // pred_fallthru
      _
    // Predicated region
    $region38: #{tpu_custom_call.1} parent=1 // pred_check
      _
    $region39: #{tpu_custom_call.1} parent=1 // pred_check_branch
      %73 = sbr.rel (0) target = $region41
    $region40: #{tpu_custom_call.1} parent=1 // pred_region
      %74 = dma.done [#allocation9], 2048
    $region41: #{tpu_custom_call.1} parent=1 // pred_fallthru
      _
    %p75 = scmp.eq.s32.totalorder 0, 0
    // Predicated region
    $region42: #{tpu_custom_call.1} parent=1 // pred_check
      %p76 = pneg %p75
    $region43: #{tpu_custom_call.1} parent=1 // pred_check_branch
      %78 = sbr.rel (%p76) target = $region45
    $region44: #{tpu_custom_call.1} parent=1 // pred_region
      %v79 = vld [vmem:[%s5] sm:$0x1]
      %v81 = vlaneseq
      %v82 = vshrl.u32 %v81, 7
      %v83 = vsub.s32 0, %v82
      %v84 = vrot.slane %v79, %v83
      %v86 = vadd.f32 %v84, 0.0
      %87 = vst [vmem:[#allocation10] sm:$0xff] %v86
    $region45: #{tpu_custom_call.1} parent=1 // pred_fallthru
      _
    %v88 = vld [vmem:[#allocation2] sm:$0xff]
    %v89 = vld [vmem:[#allocation7] sm:$0xff]
    %v90 = vld [vmem:[#allocation7 + $0x8] sm:$0xff]
    %v91 = vld [vmem:[#allocation7 + $0x10] sm:$0xff]
    %v92 = vld [vmem:[#allocation7 + $0x18] sm:$0xff]
    %v93 = vld [vmem:[#allocation7 + $0x20] sm:$0xff]
    %v94 = vld [vmem:[#allocation7 + $0x28] sm:$0xff]
    %v95 = vld [vmem:[#allocation7 + $0x30] sm:$0xff]
    %v96 = vld [vmem:[#allocation7 + $0x38] sm:$0xff]
    %v97 = vld [vmem:[#allocation7 + $0x40] sm:$0xff]
    %v98 = vld [vmem:[#allocation7 + $0x48] sm:$0xff]
    %v99 = vld [vmem:[#allocation7 + $0x50] sm:$0xff]
    %v100 = vld [vmem:[#allocation7 + $0x58] sm:$0xff]
    %v101 = vld [vmem:[#allocation7 + $0x60] sm:$0xff]
    %v102 = vld [vmem:[#allocation7 + $0x68] sm:$0xff]
    %v103 = vld [vmem:[#allocation7 + $0x70] sm:$0xff]
    %v104 = vld [vmem:[#allocation7 + $0x78] sm:$0xff]
    %v105 = vld [vmem:[#allocation5] sm:$0xff]
    %v106 = vld [vmem:[#allocation8] sm:$0xff]
    %v107 = vld [vmem:[#allocation8 + $0x8] sm:$0xff]
    %v108 = vld [vmem:[#allocation8 + $0x10] sm:$0xff]
    %v109 = vld [vmem:[#allocation8 + $0x18] sm:$0xff]
    %v110 = vld [vmem:[#allocation8 + $0x20] sm:$0xff]
    %v111 = vld [vmem:[#allocation8 + $0x28] sm:$0xff]
    %v112 = vld [vmem:[#allocation8 + $0x30] sm:$0xff]
    %v113 = vld [vmem:[#allocation8 + $0x38] sm:$0xff]
    %v114 = vld [vmem:[#allocation8 + $0x40] sm:$0xff]
    %v115 = vld [vmem:[#allocation8 + $0x48] sm:$0xff]
    %v116 = vld [vmem:[#allocation8 + $0x50] sm:$0xff]
    %v117 = vld [vmem:[#allocation8 + $0x58] sm:$0xff]
    %v118 = vld [vmem:[#allocation8 + $0x60] sm:$0xff]
    %v119 = vld [vmem:[#allocation8 + $0x68] sm:$0xff]
    %v120 = vld [vmem:[#allocation8 + $0x70] sm:$0xff]
    %v121 = vld [vmem:[#allocation8 + $0x78] sm:$0xff]
    %122 = vmatprep.subr.mxu0 0.0
    %123 = vmatpush1.msra.mxu0 %v121
    %124 = vmatprep.subr.mxu0 0.0
    %125 = vmatpush1.msra.mxu0 %v120
    %126 = vmatprep.subr.mxu0 0.0
    %127 = vmatpush1.msra.mxu0 %v119
    %128 = vmatprep.subr.mxu0 0.0
    %129 = vmatpush1.msra.mxu0 %v118
    %130 = vmatprep.subr.mxu0 0.0
    %131 = vmatpush1.msra.mxu0 %v117
    %132 = vmatprep.subr.mxu0 0.0
    %133 = vmatpush1.msra.mxu0 %v116
    %134 = vmatprep.subr.mxu0 0.0
    %135 = vmatpush1.msra.mxu0 %v115
    %136 = vmatprep.subr.mxu0 0.0
    %137 = vmatpush1.msra.mxu0 %v114
    %138 = vmatprep.subr.mxu0 0.0
    %139 = vmatpush1.msra.mxu0 %v113
    %140 = vmatprep.subr.mxu0 0.0
    %141 = vmatpush1.msra.mxu0 %v112
    %142 = vmatprep.subr.mxu0 0.0
    %143 = vmatpush1.msra.mxu0 %v111
    %144 = vmatprep.subr.mxu0 0.0
    %145 = vmatpush1.msra.mxu0 %v110
    %146 = vmatprep.subr.mxu0 0.0
    %147 = vmatpush1.msra.mxu0 %v109
    %148 = vmatprep.subr.mxu0 0.0
    %149 = vmatpush1.msra.mxu0 %v108
    %150 = vmatprep.subr.mxu0 0.0
    %151 = vmatpush1.msra.mxu0 %v107
    %152 = vmatprep.subr.mxu0 0.0
    %153 = vmatpush1.msra.mxu0 %v106
    %154 = vmatprep.subr.mxu0 0.0
    %155 = vmatpush2.msra.mxu0 0.0
    %156 = vmatprep.subr.mxu0 0.0
    %157 = vmatpush2.msra.mxu0 0.0
    %158 = vmatprep.subr.mxu0 0.0
    %159 = vmatpush2.msra.mxu0 0.0
    %160 = vmatprep.subr.mxu0 0.0
    %161 = vmatpush2.msra.mxu0 0.0
    %162 = vmatprep.subr.mxu0 0.0
    %163 = vmatpush2.msra.mxu0 0.0
    %164 = vmatprep.subr.mxu0 0.0
    %165 = vmatpush2.msra.mxu0 0.0
    %166 = vmatprep.subr.mxu0 0.0
    %167 = vmatpush2.msra.mxu0 0.0
    %168 = vmatprep.subr.mxu0 0.0
    %169 = vmatpush2.msra.mxu0 0.0
    %170 = vmatprep.subr.mxu0 0.0
    %171 = vmatpush2.msra.mxu0 0.0
    %172 = vmatprep.subr.mxu0 0.0
    %173 = vmatpush2.msra.mxu0 0.0
    %174 = vmatprep.subr.mxu0 0.0
    %175 = vmatpush2.msra.mxu0 0.0
    %176 = vmatprep.subr.mxu0 0.0
    %177 = vmatpush2.msra.mxu0 0.0
    %178 = vmatprep.subr.mxu0 0.0
    %179 = vmatpush2.msra.mxu0 0.0
    %180 = vmatprep.subr.mxu0 0.0
    %181 = vmatpush2.msra.mxu0 0.0
    %182 = vmatprep.subr.mxu0 0.0
    %183 = vmatpush2.msra.mxu0 0.0
    %184 = vmatprep.subr.mxu0 0.0
    %185 = vmatpush2.msra.mxu0 0.0
    %186 = vmatprep.mubr.f32.mxu0 0.0
    %187 = vmatmul.mubr.f32.gmra.mxu0 %v105
    %v188 = vpop.f32.mrf.mxu0
    %v189 = vadd.f32 0.0, %v188
    %v190 = vpop.f32.mrf.mxu0
    %191 = vdwg.mxu0
    %v192 = vld [vmem:[#allocation10] sm:$0xff]
    %v193 = vld [vmem:[%s4] sm:$0x1]
    %v195 = vlaneseq
    %v196 = vshrl.u32 %v195, 7
    %v197 = vsub.s32 0, %v196
    %v198 = vrot.slane %v193, %v197
    %v200 = vmul.f32 %v189, %v198
    %201 = vmatprep.subr.mxu0 0.0
    %202 = vmatpush1.msra.mxu0 %v104
    %203 = vmatprep.subr.mxu0 0.0
    %204 = vmatpush1.msra.mxu0 %v103
    %205 = vmatprep.subr.mxu0 0.0
    %206 = vmatpush1.msra.mxu0 %v102
    %207 = vmatprep.subr.mxu0 0.0
    %208 = vmatpush1.msra.mxu0 %v101
    %209 = vmatprep.subr.mxu0 0.0
    %210 = vmatpush1.msra.mxu0 %v100
    %211 = vmatprep.subr.mxu0 0.0
    %212 = vmatpush1.msra.mxu0 %v99
    %213 = vmatprep.subr.mxu0 0.0
    %214 = vmatpush1.msra.mxu0 %v98
    %215 = vmatprep.subr.mxu0 0.0
    %216 = vmatpush1.msra.mxu0 %v97
    %217 = vmatprep.subr.mxu0 0.0
    %218 = vmatpush1.msra.mxu0 %v96
    %219 = vmatprep.subr.mxu0 0.0
    %220 = vmatpush1.msra.mxu0 %v95
    %221 = vmatprep.subr.mxu0 0.0
    %222 = vmatpush1.msra.mxu0 %v94
    %223 = vmatprep.subr.mxu0 0.0
    %224 = vmatpush1.msra.mxu0 %v93
    %225 = vmatprep.subr.mxu0 0.0
    %226 = vmatpush1.msra.mxu0 %v92
    %227 = vmatprep.subr.mxu0 0.0
    %228 = vmatpush1.msra.mxu0 %v91
    %229 = vmatprep.subr.mxu0 0.0
    %230 = vmatpush1.msra.mxu0 %v90
    %231 = vmatprep.subr.mxu0 0.0
    %232 = vmatpush1.msra.mxu0 %v89
    %233 = vmatprep.subr.mxu0 0.0
    %234 = vmatpush2.msra.mxu0 0.0
    %235 = vmatprep.subr.mxu0 0.0
    %236 = vmatpush2.msra.mxu0 0.0
    %237 = vmatprep.subr.mxu0 0.0
    %238 = vmatpush2.msra.mxu0 0.0
    %239 = vmatprep.subr.mxu0 0.0
    %240 = vmatpush2.msra.mxu0 0.0
    %241 = vmatprep.subr.mxu0 0.0
    %242 = vmatpush2.msra.mxu0 0.0
    %243 = vmatprep.subr.mxu0 0.0
    %244 = vmatpush2.msra.mxu0 0.0
    %245 = vmatprep.subr.mxu0 0.0
    %246 = vmatpush2.msra.mxu0 0.0
    %247 = vmatprep.subr.mxu0 0.0
    %248 = vmatpush2.msra.mxu0 0.0
    %249 = vmatprep.subr.mxu0 0.0
    %250 = vmatpush2.msra.mxu0 0.0
    %251 = vmatprep.subr.mxu0 0.0
    %252 = vmatpush2.msra.mxu0 0.0
    %253 = vmatprep.subr.mxu0 0.0
    %254 = vmatpush2.msra.mxu0 0.0
    %255 = vmatprep.subr.mxu0 0.0
    %256 = vmatpush2.msra.mxu0 0.0
    %257 = vmatprep.subr.mxu0 0.0
    %258 = vmatpush2.msra.mxu0 0.0
    %259 = vmatprep.subr.mxu0 0.0
    %260 = vmatpush2.msra.mxu0 0.0
    %261 = vmatprep.subr.mxu0 0.0
    %262 = vmatpush2.msra.mxu0 0.0
    %263 = vmatprep.subr.mxu0 0.0
    %264 = vmatpush2.msra.mxu0 0.0
    %265 = vmatprep.mubr.f32.mxu0 0.0
    %266 = vmatmul.mubr.f32.gmra.mxu0 %v88
    %v267 = vpop.f32.mrf.mxu0
    %v268 = vadd.f32 %v200, %v267
    %v269 = vpop.f32.mrf.mxu0
    %270 = vdwg.mxu0
    %v271 = vadd.f32 %v192, %v268
    %272 = vst [vmem:[#allocation10] sm:$0xff] %v271
    // Predicated region
    $region46: #{tpu_custom_call.1} parent=1 // pred_check
      _
    $region47: #{tpu_custom_call.1} parent=1 // pred_check_branch
      %274 = sbr.rel (0) target = $region49
    $region48: #{tpu_custom_call.1} parent=1 // pred_region
      %s276 = ssub.s32 128, 128
      %277 = vsyncadd [#allocation4], %s276
      %s279 = sshll.u32 [#allocation10], 4
      %s280 = int_to_ptr.vmem [resolvable:$true] %s279
      %282 = dma.vmem_to_hbm [thread:$0]  %s280, 128, %s6, [#allocation4]
    $region49: #{tpu_custom_call.1} parent=1 // pred_fallthru
      _
    // Predicated region
    $region50: #{tpu_custom_call.1} parent=1 // pred_check
      _
    $region51: #{tpu_custom_call.1} parent=1 // pred_check_branch
      %284 = sbr.rel (0) target = $region53
    $region52: #{tpu_custom_call.1} parent=1 // pred_region
      %285 = dma.done [#allocation4], 128
    $region53: #{tpu_custom_call.1} parent=1 // pred_fallthru
      _
    %286 = vsyncpa [#allocation3], 1
    %287 = vsyncpa [#allocation6], 1
    %288 = vsyncpa [#allocation9], 1
    %289 = vsyncpa [#allocation4], 1

</llo_original>
